<compile_context>
chip_gen: v6e
topology: v6e:2x2x1
jax: 0.10.0
libtpu: 0.0.40
codegen_flags: <defaults>
</compile_context>

<pallas_src>
import jax
import jax.numpy as jnp
from jax import lax
from jax.experimental import pallas as pl
from jax.experimental.pallas import tpu as pltpu


# ----------------------------------------------------------------------------
# Helpers
# ----------------------------------------------------------------------------
def _vmem_limit_bytes():
    """Generation-aware VMEM budget (falls back to a conservative 32 MiB)."""
    try:
        cap = pltpu.get_tpu_info().vmem_capacity_bytes
        return int(min(cap * 3 // 4, 96 * 1024 * 1024))
    except Exception:
        return 32 * 1024 * 1024


def _pick_seq_tile(n, candidates):
    """Largest candidate that evenly divides n, else n itself (small shapes)."""
    for c in candidates:
        if n >= c and n % c == 0:
            return c
    return n


def _pick_proj_tile(m, d_in, d_out, itemsize, budget):
    """Largest M-tile whose double-buffered x/out blocks fit the budget."""
    cands = [c for c in (2048, 1024, 512, 256, 128, 64, 32, 16, 8)
             if m >= c and m % c == 0]
    for c in cands:
        if 2 * c * (d_in + d_out) * itemsize <= budget:
            return c
    return cands[-1] if cands else m


# ----------------------------------------------------------------------------
# Kernel 1: fused QKV projection — one matmul per x tile, lane-dense stores.
# ----------------------------------------------------------------------------
def _qkv_proj_kernel(x_ref, w_ref, q_ref, kv_ref):
    hd = q_ref.shape[-1]
    y = jnp.dot(x_ref[...], w_ref[...], preferred_element_type=jnp.float32)
    q_ref[...] = y[:, :hd].astype(q_ref.dtype)
    kv_ref[...] = y[:, hd:].astype(kv_ref.dtype)


def pallas_qkv_proj(x, w_qkv, hd):
    """x: [M, D]; w_qkv: [D, 3*HD] (= [Wq*scale | Wk | Wv]) -> (q [M,HD], kv [M,2*HD])."""
    M, D = x.shape
    three_hd = w_qkv.shape[1]
    assert three_hd == 3 * hd
    itemsize = x.dtype.itemsize
    vmem_limit = _vmem_limit_bytes()
    TM = _pick_proj_tile(M, D, three_hd, itemsize, vmem_limit // 2)

    cost = pl.CostEstimate(
        flops=2 * M * D * three_hd,
        transcendentals=0,
        bytes_accessed=(M * D + D * three_hd + M * three_hd) * itemsize,
    )
    return pl.pallas_call(
        _qkv_proj_kernel,
        out_shape=(jax.ShapeDtypeStruct((M, hd), x.dtype),
                   jax.ShapeDtypeStruct((M, 2 * hd), x.dtype)),
        grid=(M // TM,),
        in_specs=[pl.BlockSpec((TM, D), lambda i: (i, 0)),
                  pl.BlockSpec((D, three_hd), lambda i: (0, 0))],
        out_specs=(pl.BlockSpec((TM, hd), lambda i: (i, 0)),
                   pl.BlockSpec((TM, 2 * hd), lambda i: (i, 0))),
        compiler_params=pltpu.CompilerParams(
            dimension_semantics=("parallel",),
            vmem_limit_bytes=vmem_limit),
        cost_estimate=cost,
    )(x, w_qkv)


# ----------------------------------------------------------------------------
# Kernel 2: flash-style MHA with resident K/V per batch + fused out-projection.
# ----------------------------------------------------------------------------
def _make_attn_kernel(heads, dim_head, n_kv_chunks, tk, exp_in_bf16, approx_recip):
    hd = heads * dim_head

    def kernel(q_ref, kv_ref, wo_ref, bo_ref, o_ref, acc_ref, m_ref, l_ref):
        # Everything for this (batch, q-tile) is self-contained in one grid
        # step, so init/finalize need no pl.when gating.
        m_ref[...] = jnp.full(m_ref.shape, -jnp.inf, dtype=m_ref.dtype)
        l_ref[...] = jnp.zeros(l_ref.shape, dtype=l_ref.dtype)
        acc_ref[...] = jnp.zeros(acc_ref.shape, dtype=acc_ref.dtype)

        q = q_ref[0]  # (TQ, HD); softmax scale already folded into Wq.

        def kv_step(c, carry):
            start = pl.multiple_of(c * tk, tk)
            kv = kv_ref[0, pl.ds(start, tk), :]          # (TK, 2*HD)
            # TODO(synk): a lax.fori_loop over heads (or per-head ref views)
            #             would bound the live range of each head's (TQ, TK)
            #             score/prob block; verify spills in a bundle dump.
            for h in range(heads):
                lo, hi = h * dim_head, (h + 1) * dim_head
                qh = q[:, lo:hi]                         # (TQ, Dh)
                kh = kv[:, lo:hi]                        # (TK, Dh)
                vh = kv[:, hd + lo:hd + hi]              # (TK, Dh)

                # QK^T without an explicit transpose: contract last dims.
                s = lax.dot_general(qh, kh, (((1,), (1,)), ((), ())),
                                    preferred_element_type=jnp.float32)

                m_prev = m_ref[h]                        # (TQ, 1)
                m_new = jnp.maximum(m_prev, jnp.max(s, axis=-1, keepdims=True))
                alpha = jnp.exp(m_prev - m_new)
                if exp_in_bf16:
                    # bf16 EUP path (v6e/v7x); row-sum and stats stay f32.
                    p = jnp.exp((s - m_new).astype(jnp.bfloat16))
                    p_sum = jnp.sum(p.astype(jnp.float32), axis=-1, keepdims=True)
                else:
                    p = jnp.exp(s - m_new)
                    p_sum = jnp.sum(p, axis=-1, keepdims=True)

                l_ref[h] = alpha * l_ref[h] + p_sum
                acc_ref[h] = alpha * acc_ref[h] + jnp.dot(
                    p.astype(vh.dtype), vh, preferred_element_type=jnp.float32)
                m_ref[h] = m_new
            return carry

        lax.fori_loop(0, n_kv_chunks, kv_step, jnp.int32(0),
                      unroll=(n_kv_chunks <= 8))

        # Finalize: normalize each head, concat, and fuse the output projection.
        wo = wo_ref[...]                                  # (HD, D)
        outs = []
        for h in range(heads):
            inv = pl.reciprocal(l_ref[h], approx=approx_recip)
            outs.append((acc_ref[h] * inv).astype(wo.dtype))
        att = jnp.concatenate(outs, axis=-1)              # (TQ, HD), lane-dense
        y = jnp.dot(att, wo, preferred_element_type=jnp.float32)
        y = y + bo_ref[...].astype(jnp.float32)
        o_ref[0] = y.astype(o_ref.dtype)

    return kernel


def pallas_attention(q, kv, wo, bo, heads, dim_head):
    """q: [B, N, HD], kv: [B, N, 2*HD], wo: [HD, D], bo: [1, D] -> [B, N, D]."""
    B, N, HD = q.shape
    assert HD == heads * dim_head
    D = wo.shape[1]
    dtype = q.dtype
    itemsize = dtype.itemsize

    # TQ prefers 256 (2x256 MXU on v6e/v7x); TK defaults to 128 everywhere
    # (v5e-friendly, halves the f32 score-block footprint). Small N falls back.
    TQ = _pick_seq_tile(N, (256, 128))
    TK = _pick_seq_tile(N, (128,))
    n_chunks = N // TK

    exp_in_bf16 = dtype == jnp.bfloat16
    approx_recip = dtype == jnp.bfloat16   # exact reciprocal for f32 outputs

    vmem_limit = _vmem_limit_bytes()

    cost = pl.CostEstimate(
        flops=4 * B * heads * N * N * dim_head + 2 * B * N * HD * D,
        transcendentals=B * heads * N * N,
        # q + resident kv (read once per batch) + Wo + output.
        bytes_accessed=(B * N * HD + B * N * 2 * HD + HD * D + B * N * D) * itemsize,
    )

    kernel = _make_attn_kernel(heads, dim_head, n_chunks, TK,
                               exp_in_bf16, approx_recip)

    return pl.pallas_call(
        kernel,
        out_shape=jax.ShapeDtypeStruct((B, N, D), dtype),
        grid=(B, N // TQ),
        in_specs=[
            pl.BlockSpec((1, TQ, HD), lambda b, qi: (b, qi, 0)),
            # Resident K/V: index_map independent of qi -> fetched once per batch.
            pl.BlockSpec((1, N, 2 * HD), lambda b, qi: (b, 0, 0)),
            pl.BlockSpec((HD, D), lambda b, qi: (0, 0)),
            pl.BlockSpec((1, D), lambda b, qi: (0, 0)),
        ],
        out_specs=pl.BlockSpec((1, TQ, D), lambda b, qi: (b, qi, 0)),
        scratch_shapes=[
            pltpu.VMEM((heads, TQ, dim_head), jnp.float32),  # acc
            pltpu.VMEM((heads, TQ, 1), jnp.float32),         # running max
            pltpu.VMEM((heads, TQ, 1), jnp.float32),         # running sum
        ],
        compiler_params=pltpu.CompilerParams(
            # No cross-step carry: both axes are parallel (v7x megacore shards
            # over B * N//TQ; keep that extent >= 2 and preferably even).
            dimension_semantics=("parallel", "parallel"),
            vmem_limit_bytes=vmem_limit),
        cost_estimate=cost,
    )(q, kv, wo, bo)


# ----------------------------------------------------------------------------
# Module wrapper
# ----------------------------------------------------------------------------
def attention_forward(x, params, heads, dim_head):
    """Equivalent of Attention.forward(x) with context/mask/rotary/bias = None."""
    B, N, D = x.shape
    HD = heads * dim_head
    scale = dim_head ** (-0.5)

    # One fused (D, 3*HD) projection weight; softmax scale folded into Wq.
    w_qkv = jnp.concatenate([params["Wq"] * scale, params["Wkv"]], axis=1)

    xf = x.reshape(B * N, D)
    q, kv = pallas_qkv_proj(xf, w_qkv, HD)                # [B*N, HD], [B*N, 2*HD]
    q3 = q.reshape(B, N, HD)
    kv3 = kv.reshape(B, N, 2 * HD)

    # Attention + fused output projection.
    return pallas_attention(q3, kv3, params["Wo"], params["bo"], heads, dim_head)


# Pure-JAX reference for verification.
def attention_reference(x, params, heads, dim_head):
    B, N, D = x.shape
    inner = heads * dim_head
    scale = dim_head ** (-0.5)
    q = x @ params["Wq"]
    kv = x @ params["Wkv"]
    k, v = kv[..., :inner], kv[..., inner:]
    sh = lambda t: t.reshape(B, N, heads, dim_head).transpose(0, 2, 1, 3)
    qh, kh, vh = sh(q), sh(k), sh(v)
    sim = jnp.einsum("bhid,bhjd->bhij", qh, kh) * scale
    attn = jax.nn.softmax(sim, axis=-1)
    out = jnp.einsum("bhij,bhjd->bhid", attn, vh)
    out = out.transpose(0, 2, 1, 3).reshape(B, N, inner)
    return out @ params["Wo"] + params["bo"][0]


if __name__ == "__main__":
    # Small, module-consistent shapes.
    B, N, D = 2, 8, 32          # batch, seq, model dim
    heads, dim_head = 4, 16     # inner_dim = 64
    inner = heads * dim_head

    key = jax.random.PRNGKey(0)
    kx, kq, kkv, kwo, kbo = jax.random.split(key, 5)

    x = jax.random.normal(kx, (B, N, D), dtype=jnp.float32)
    params = {
        "Wq":  jax.random.normal(kq,  (D, inner), dtype=jnp.float32) * 0.05,
        "Wkv": jax.random.normal(kkv, (D, 2 * inner), dtype=jnp.float32) * 0.05,
        "Wo":  jax.random.normal(kwo, (inner, D), dtype=jnp.float32) * 0.05,
        "bo":  jax.random.normal(kbo, (1, D), dtype=jnp.float32) * 0.05,
    }

    y = attention_forward(x, params, heads, dim_head)
    y = jax.block_until_ready(y)

    y_ref = attention_reference(x, params, heads, dim_head)
    assert jnp.allclose(y, y_ref, atol=2e-3, rtol=2e-3), "mismatch vs reference"

    print("KERNEL_OK")
</pallas_src>

<mosaic_0001>
module attributes {stable_mosaic.version = 11 : i64} {
  func.func @_qkv_proj_kernel(%arg0: i32, %arg1: memref<16x32xf32, #tpu.memory_space<vmem>>, %arg2: memref<32x192xf32, #tpu.memory_space<vmem>>, %arg3: memref<16x64xf32, #tpu.memory_space<vmem>>, %arg4: memref<16x128xf32, #tpu.memory_space<vmem>>) attributes {dimension_semantics = [#tpu.dimension_semantics<parallel>], iteration_bounds = array<i64: 1>, scalar_prefetch = 0 : i64, scratch_operands = 0 : i64, tpu.core_type = #tpu.core_type<tc>, window_params = [{transform_indices = @transform_0, window_bounds = array<i64: 16, 32>}, {pipeline_mode = #tpu.pipeline_mode<synchronous>, transform_indices = @transform_1, window_bounds = array<i64: 32, 192>}, {transform_indices = @transform_2, window_bounds = array<i64: 16, 64>}, {transform_indices = @transform_3, window_bounds = array<i64: 16, 128>}]} {
    %c0 = arith.constant 0 : index
    %c0_0 = arith.constant 0 : index
    %0 = vector.load %arg1[%c0, %c0_0] : memref<16x32xf32, #tpu.memory_space<vmem>>, vector<16x32xf32>
    %c0_1 = arith.constant 0 : index
    %c0_2 = arith.constant 0 : index
    %1 = vector.load %arg2[%c0_1, %c0_2] : memref<32x192xf32, #tpu.memory_space<vmem>>, vector<32x192xf32>
    %cst = arith.constant dense<0.000000e+00> : vector<16x192xf32>
    %2 = tpu.matmul %0, %1, %cst {dimension_numbers = #tpu.dot_dimension_numbers<[1], [0], [0], [1], [0, 0, 1, 1], [], []>} : vector<16x32xf32>, vector<32x192xf32>, vector<16x192xf32> -> vector<16x192xf32>
    %3 = vector.extract_strided_slice %2 {offsets = [0, 0], sizes = [16, 64], strides = [1, 1]} : vector<16x192xf32> to vector<16x64xf32>
    %c0_3 = arith.constant 0 : index
    %c0_4 = arith.constant 0 : index
    %4 = vector.load %arg3[%c0_3, %c0_4] : memref<16x64xf32, #tpu.memory_space<vmem>>, vector<16x64xf32>
    tpu.vector_store %arg3[%c0_3, %c0_4], %3 {strides = array<i32>} : memref<16x64xf32, #tpu.memory_space<vmem>>, vector<16x64xf32>,
    %5 = vector.extract_strided_slice %2 {offsets = [0, 64], sizes = [16, 128], strides = [1, 1]} : vector<16x192xf32> to vector<16x128xf32>
    %c0_5 = arith.constant 0 : index
    %c0_6 = arith.constant 0 : index
    %6 = vector.load %arg4[%c0_5, %c0_6] : memref<16x128xf32, #tpu.memory_space<vmem>>, vector<16x128xf32>
    tpu.vector_store %arg4[%c0_5, %c0_6], %5 {strides = array<i32>} : memref<16x128xf32, #tpu.memory_space<vmem>>, vector<16x128xf32>,
    return
  }
  func.func @transform_0(%arg0: i32) -> (i32, i32) {
    %c0_i32 = arith.constant 0 : i32
    %c0_i32_0 = arith.constant 0 : i32
    return %arg0, %c0_i32 : i32, i32
  }
  func.func @transform_1(%arg0: i32) -> (i32, i32) {
    %c0_i32 = arith.constant 0 : i32
    %c0_i32_0 = arith.constant 0 : i32
    %c0_i32_1 = arith.constant 0 : i32
    return %c0_i32, %c0_i32_0 : i32, i32
  }
  func.func @transform_2(%arg0: i32) -> (i32, i32) {
    %c0_i32 = arith.constant 0 : i32
    %c0_i32_0 = arith.constant 0 : i32
    return %arg0, %c0_i32 : i32, i32
  }
  func.func @transform_3(%arg0: i32) -> (i32, i32) {
    %c0_i32 = arith.constant 0 : i32
    %c0_i32_0 = arith.constant 0 : i32
    return %arg0, %c0_i32 : i32, i32
  }
}

</mosaic_0001>

<llo_original>
// kernel: tpu_custom_call.1
$region0: #{tpu_custom_call.1}
  #allocation0 [shape = 'u32[]', space=smem, size = 0x4, offset = 0x4, fixed_abs, tag = 'smem constant byte address 0x4 - core index']
  #allocation1 [shape = 'u32[144,128]{1,0:T(1,128)}', space=vmem, size = 0x12000, scoped, tag = 'internal scratch']
  %s0 = inlined_call_operand.hbm [shape: f32[16,32], index: 0, kind: input, shape index: {}]
  %s1 = inlined_call_operand.hbm [shape: f32[32,192], index: 1, kind: input, shape index: {}]
  %s2 = inlined_call_operand.hbm [shape: f32[16,64], index: 2, kind: output, shape index: {0}]
  %s3 = inlined_call_operand.hbm [shape: f32[16,128], index: 3, kind: output, shape index: {1}]
  %4 = xla_tuple %s2, %s3
  %s5 = sld [smem:[#allocation0]]
  $region34: #{tpu_custom_call.1} parent=0
    _
  %s7 = ssub.s32 1, %s5
  %s8 = scalar_select 0, %s7, %s5
  $region1: #{tpu_custom_call.1} parent=0
    #allocation2 [shape = 'u8[8192]{0}', space=vmem, size = 0x2000, scoped, tag = 'input window, operand 0, single buffered']
    #allocation3 [shape = 's32[1]{0}', space=sflag, size = 0x4, scoped, tag = 'scoped memory for tpu_custom_call.1']
    #allocation4 [shape = 's32[1]{0}', space=sflag, size = 0x4, scoped, tag = 'scoped memory for tpu_custom_call.1']
    #allocation5 [shape = 'u8[32768]{0}', space=vmem, size = 0x8000, scoped, tag = 'input window, operand 1, single buffered']
    #allocation6 [shape = 's32[1]{0}', space=sflag, size = 0x4, scoped, tag = 'scoped memory for tpu_custom_call.1']
    #allocation7 [shape = 'u8[8192]{0}', space=vmem, size = 0x2000, scoped, tag = 'output window, operand 0, single buffered']
    #allocation8 [shape = 'u8[8192]{0}', space=vmem, size = 0x2000, scoped, tag = 'output window, operand 1, single buffered']
    #allocation9 [shape = 's32[1]{0}', space=sflag, size = 0x4, scoped, tag = 'scoped memory for tpu_custom_call.1']
    %9 = vsyncpa [#allocation3], 0
    %10 = vsyncpa [#allocation6], 0
    %11 = vsyncpa [#allocation4], 0
    %12 = vsyncpa [#allocation9], 0
    // Predicated region
    $region2: #{tpu_custom_call.1} parent=1 // pred_check
      _
    $region3: #{tpu_custom_call.1} parent=1 // pred_check_branch
      %14 = sbr.rel (0) target = $region5
    $region4: #{tpu_custom_call.1} parent=1 // pred_region
      %s16 = ssub.s32 256, 256
      %17 = vsyncadd [#allocation3], %s16
      %s18 = sshll.u32 [#allocation2], 4
      %s19 = int_to_ptr.vmem [resolvable:$true] %s18
      %24 = dma.hbm_to_vmem [thread:$0]  %s0, 256, %s19, [#allocation3], 128, 128, 8
    $region5: #{tpu_custom_call.1} parent=1 // pred_fallthru
      _
    // Predicated region
    $region6: #{tpu_custom_call.1} parent=1 // pred_check
      _
    $region7: #{tpu_custom_call.1} parent=1 // pred_check_branch
      %26 = sbr.rel (0) target = $region9
    $region8: #{tpu_custom_call.1} parent=1 // pred_region
      %s28 = ssub.s32 1024, 1024
      %29 = vsyncadd [#allocation6], %s28
      %s30 = sshll.u32 [#allocation5], 4
      %s31 = int_to_ptr.vmem [resolvable:$true] %s30
      %36 = dma.hbm_to_vmem [thread:$0]  %s1, 1024, %s31, [#allocation6], 256, 256, 16
    $region9: #{tpu_custom_call.1} parent=1 // pred_fallthru
      _
    // Predicated region
    $region10: #{tpu_custom_call.1} parent=1 // pred_check
      _
    $region11: #{tpu_custom_call.1} parent=1 // pred_check_branch
      %38 = sbr.rel (0) target = $region13
    $region12: #{tpu_custom_call.1} parent=1 // pred_region
      %39 = dma.done [#allocation3], 256
    $region13: #{tpu_custom_call.1} parent=1 // pred_fallthru
      _
    // Predicated region
    $region14: #{tpu_custom_call.1} parent=1 // pred_check
      _
    $region15: #{tpu_custom_call.1} parent=1 // pred_check_branch
      %41 = sbr.rel (0) target = $region17
    $region16: #{tpu_custom_call.1} parent=1 // pred_region
      %42 = dma.done [#allocation6], 1024
    $region17: #{tpu_custom_call.1} parent=1 // pred_fallthru
      _
    %v43 = vld [vmem:[#allocation2] sm:$0xff]
    %v44 = vld [vmem:[#allocation2 + $0x8] sm:$0xff]
    %v45 = vld [vmem:[#allocation5] sm:$0xff]
    %v46 = vld [vmem:[#allocation5 + $0x8] sm:$0xff]
    %v47 = vld [vmem:[#allocation5 + $0x10] sm:$0xff]
    %v48 = vld [vmem:[#allocation5 + $0x18] sm:$0xff]
    %v49 = vld [vmem:[#allocation5 + $0x20] sm:$0xff]
    %v50 = vld [vmem:[#allocation5 + $0x28] sm:$0xff]
    %v51 = vld [vmem:[#allocation5 + $0x30] sm:$0xff]
    %v52 = vld [vmem:[#allocation5 + $0x38] sm:$0xff]
    %vm53 = vcmask 261120
    %v55 = vsel %vm53, %v43, 0
    %v58 = vsel %vm53, %v44, 0
    %60 = vmatprep.subr.mxu0 0.0
    %61 = vmatpush1.msra.mxu0 0.0
    %62 = vmatprep.subr.mxu0 0.0
    %63 = vmatpush1.msra.mxu0 0.0
    %64 = vmatprep.subr.mxu0 0.0
    %65 = vmatpush1.msra.mxu0 0.0
    %66 = vmatprep.subr.mxu0 0.0
    %67 = vmatpush1.msra.mxu0 0.0
    %68 = vmatprep.subr.mxu0 0.0
    %69 = vmatpush1.msra.mxu0 0.0
    %70 = vmatprep.subr.mxu0 0.0
    %71 = vmatpush1.msra.mxu0 0.0
    %72 = vmatprep.subr.mxu0 0.0
    %73 = vmatpush1.msra.mxu0 0.0
    %74 = vmatprep.subr.mxu0 0.0
    %75 = vmatpush1.msra.mxu0 0.0
    %76 = vmatprep.subr.mxu0 0.0
    %77 = vmatpush1.msra.mxu0 0.0
    %78 = vmatprep.subr.mxu0 0.0
    %79 = vmatpush1.msra.mxu0 0.0
    %80 = vmatprep.subr.mxu0 0.0
    %81 = vmatpush1.msra.mxu0 0.0
    %82 = vmatprep.subr.mxu0 0.0
    %83 = vmatpush1.msra.mxu0 0.0
    %84 = vmatprep.subr.mxu0 %v52
    %85 = vmatpush1.msra.mxu0 %v51
    %86 = vmatprep.subr.mxu0 %v50
    %87 = vmatpush1.msra.mxu0 %v49
    %88 = vmatprep.subr.mxu0 %v48
    %89 = vmatpush1.msra.mxu0 %v47
    %90 = vmatprep.subr.mxu0 %v46
    %91 = vmatpush1.msra.mxu0 %v45
    %92 = vmatprep.subr.mxu0 0.0
    %93 = vmatpush2.msra.mxu0 0.0
    %94 = vmatprep.subr.mxu0 0.0
    %95 = vmatpush2.msra.mxu0 0.0
    %96 = vmatprep.subr.mxu0 0.0
    %97 = vmatpush2.msra.mxu0 0.0
    %98 = vmatprep.subr.mxu0 0.0
    %99 = vmatpush2.msra.mxu0 0.0
    %100 = vmatprep.subr.mxu0 0.0
    %101 = vmatpush2.msra.mxu0 0.0
    %102 = vmatprep.subr.mxu0 0.0
    %103 = vmatpush2.msra.mxu0 0.0
    %104 = vmatprep.subr.mxu0 0.0
    %105 = vmatpush2.msra.mxu0 0.0
    %106 = vmatprep.subr.mxu0 0.0
    %107 = vmatpush2.msra.mxu0 0.0
    %108 = vmatprep.subr.mxu0 0.0
    %109 = vmatpush2.msra.mxu0 0.0
    %110 = vmatprep.subr.mxu0 0.0
    %111 = vmatpush2.msra.mxu0 0.0
    %112 = vmatprep.subr.mxu0 0.0
    %113 = vmatpush2.msra.mxu0 0.0
    %114 = vmatprep.subr.mxu0 0.0
    %115 = vmatpush2.msra.mxu0 0.0
    %116 = vmatprep.subr.mxu0 0.0
    %117 = vmatpush2.msra.mxu0 0.0
    %118 = vmatprep.subr.mxu0 0.0
    %119 = vmatpush2.msra.mxu0 0.0
    %120 = vmatprep.subr.mxu0 0.0
    %121 = vmatpush2.msra.mxu0 0.0
    %122 = vmatprep.subr.mxu0 0.0
    %123 = vmatpush2.msra.mxu0 0.0
    %124 = vmatprep.mubr.f32.mxu0 0.0
    %125 = vmatmul.mubr.f32.gmra.mxu0 %v55
    %v126 = vpop.f32.mrf.mxu0
    %v127 = vadd.f32 0.0, %v126
    %v128 = vpop.f32.mrf.mxu0
    %v129 = vadd.f32 0.0, %v128
    %130 = vmatprep.mubr.f32.mxu0 0.0
    %131 = vmatmul.mubr.f32.gmra.mxu0 %v58
    %v132 = vpop.f32.mrf.mxu0
    %v133 = vadd.f32 0.0, %v132
    %v134 = vpop.f32.mrf.mxu0
    %v135 = vadd.f32 0.0, %v134
    %136 = vdwg.mxu0
    %vm137 = vcmask 523264
    %138 = vst.msk [vmem:[#allocation7] sm:$0xff] %vm137, %v127
    %139 = vst.msk [vmem:[#allocation7 + $0x8] sm:$0xff] %vm137, %v133
    %144 = vrot.lane.b32.xlu0 %v127, 64
    %v145 = vpop.permute.xlu0 %144
    %146 = vrot.lane.b32.xlu0 %v129, 64
    %v147 = vpop.permute.xlu0 %146
    %148 = vrot.lane.b32.xlu0 %v133, 64
    %v149 = vpop.permute.xlu0 %148
    %150 = vrot.lane.b32.xlu0 %v135, 64
    %v151 = vpop.permute.xlu0 %150
    %v152 = vsel %vm137, %v145, %v147
    %v153 = vsel %vm137, %v149, %v151
    %156 = vst [vmem:[#allocation8] sm:$0xff] %v152
    %157 = vst [vmem:[#allocation8 + $0x8] sm:$0xff] %v153
    // Predicated region
    $region18: #{tpu_custom_call.1} parent=1 // pred_check
      _
    $region19: #{tpu_custom_call.1} parent=1 // pred_check_branch
      %159 = sbr.rel (0) target = $region21
    $region20: #{tpu_custom_call.1} parent=1 // pred_region
      %s161 = ssub.s32 256, 256
      %162 = vsyncadd [#allocation4], %s161
      %s163 = sshll.u32 [#allocation7], 4
      %s164 = int_to_ptr.vmem [resolvable:$true] %s163
      %169 = dma.vmem_to_hbm [thread:$0]  %s164, 256, %s2, [#allocation4], 128, 128, 8
    $region21: #{tpu_custom_call.1} parent=1 // pred_fallthru
      _
    // Predicated region
    $region22: #{tpu_custom_call.1} parent=1 // pred_check
      _
    $region23: #{tpu_custom_call.1} parent=1 // pred_check_branch
      %171 = sbr.rel (0) target = $region25
    $region24: #{tpu_custom_call.1} parent=1 // pred_region
      %s173 = ssub.s32 256, 256
      %174 = vsyncadd [#allocation9], %s173
      %s175 = sshll.u32 [#allocation8], 4
      %s176 = int_to_ptr.vmem [resolvable:$true] %s175
      %181 = dma.vmem_to_hbm [thread:$0]  %s176, 256, %s3, [#allocation9], 128, 128, 8
    $region25: #{tpu_custom_call.1} parent=1 // pred_fallthru
      _
    // Predicated region
    $region26: #{tpu_custom_call.1} parent=1 // pred_check
      _
    $region27: #{tpu_custom_call.1} parent=1 // pred_check_branch
      %183 = sbr.rel (0) target = $region29
    $region28: #{tpu_custom_call.1} parent=1 // pred_region
      %184 = dma.done [#allocation4], 256
    $region29: #{tpu_custom_call.1} parent=1 // pred_fallthru
      _
    // Predicated region
    $region30: #{tpu_custom_call.1} parent=1 // pred_check
      _
    $region31: #{tpu_custom_call.1} parent=1 // pred_check_branch
      %186 = sbr.rel (0) target = $region33
    $region32: #{tpu_custom_call.1} parent=1 // pred_region
      %187 = dma.done [#allocation9], 256
    $region33: #{tpu_custom_call.1} parent=1 // pred_fallthru
      _
    %188 = vsyncpa [#allocation3], 1
    %189 = vsyncpa [#allocation6], 1
    %190 = vsyncpa [#allocation4], 1
    %191 = vsyncpa [#allocation9], 1

</llo_original>
